<compile_context>
chip_gen: v5e
topology: v5e:2x2
jax: 0.10.0
libtpu: 0.0.40
codegen_flags: <defaults>
</compile_context>

<pallas_src>
import functools
import math

import jax
import jax.numpy as jnp
from jax.experimental import pallas as pl
from jax.experimental.pallas import tpu as pltpu


def _round_up(x, m):
    return ((x + m - 1) // m) * m


_INV_SQRT2 = 1.0 / math.sqrt(2.0)
_SQRT_2_OVER_PI = math.sqrt(2.0 / math.pi)


def _gelu(x, approximate=False):
    if approximate:
        # tanh formulation -> EUP slot (cheap); ~1e-3 rel err vs exact erf.
        return 0.5 * x * (1.0 + jnp.tanh(_SQRT_2_OVER_PI * (x + 0.044715 * x * x * x)))
    # PyTorch nn.GELU() default: exact erf formulation.
    return 0.5 * x * (1.0 + jax.lax.erf(x * _INV_SQRT2))


def _joint_policy_pis_kernel(s_ref, t_ref, *refs, approximate_gelu=False):
    """refs = (w1, b1, w2, b2, ..., wL, bL, o_ref)."""
    o_ref = refs[-1]
    wb = refs[:-1]
    n_layers = len(wb) // 2

    # Fused s + t followed by the leading GELU; VPU/EUP math stays in f32
    # (v5e has no bf16 VPU/EUP; exactness of GELU preserved).
    h = _gelu(
        s_ref[...].astype(jnp.float32) + t_ref[...].astype(jnp.float32),
        approximate_gelu,
    )

    for i in range(n_layers):
        w = wb[2 * i][...]
        b = wb[2 * i + 1][...].astype(jnp.float32)
        # Cast activations to the weight dtype so bf16 weights hit the native
        # bf16 MXU path; always accumulate in f32.
        h = jnp.dot(h.astype(w.dtype), w, preferred_element_type=jnp.float32) + b
        if i < n_layers - 1:
            h = _gelu(h, approximate_gelu)

    o_ref[...] = h.astype(o_ref.dtype)


def _vmem_capacity_bytes():
    try:
        info = pltpu.get_tpu_info()
        cap = getattr(info, "vmem_capacity_bytes", None)
        if cap:
            return int(cap)
    except Exception:
        pass
    return 64 * 1024 * 1024  # conservative floor (v7x per-TensorCore VMEM)


def joint_policy_pis_forward(s, t, params, *, block_batch=4096, use_bf16=False,
                             approximate_gelu=False):
    """Pallas-fused forward of JointPolicyPIS.

    s, t: [B, hidden_dim]  (s_emb_dim == t_dim == hidden_dim)
    params: list of (w, b); w: [in_features, out_features] (transpose of the
            torch nn.Linear weight layout), b: [1, out_features].
    """
    assert s.shape == t.shape, "s and t must have identical shapes"
    B, feat = s.shape
    n_layers = len(params)
    hidden = params[0][0].shape[1]
    out_dim = params[-1][0].shape[1]
    out_dtype = s.dtype

    hidden_pad = _round_up(hidden, 128)

    in_dtype = jnp.bfloat16 if use_bf16 else s.dtype
    w_dtype = jnp.bfloat16 if use_bf16 else params[0][0].dtype

    s_in = s.astype(in_dtype)
    t_in = t.astype(in_dtype)

    # Zero-pad hidden lane dims to multiples of 128 (exact: padded weight
    # rows/cols and bias lanes are zero, so padded activations stay 0 through
    # GELU and contribute nothing).  Output lane dim stays UNPADDED (masked
    # store is far cheaper than 16x write amplification + an XLA slice).
    padded = []
    for i, (w, b) in enumerate(params):
        rows = w.shape[0] if i == 0 else hidden_pad
        cols = out_dim if i == n_layers - 1 else hidden_pad
        w = jnp.pad(w, ((0, rows - w.shape[0]), (0, cols - w.shape[1]))).astype(w_dtype)
        b = jnp.pad(b, ((0, 0), (0, cols - b.shape[1])))  # biases stay f32 (tiny)
        padded.append((w, b))
    flat_params = [a for pair in padded for a in pair]

    # ---- batch tile choice ---------------------------------------------------
    sublane = 16 if in_dtype == jnp.bfloat16 else 8
    if B > block_batch:
        tb = _round_up(block_batch, sublane)          # grid >= 2 automatically
    elif B >= 2 * sublane:
        # Split into >= 2 grid steps so both v7x TensorCores get work.
        tb = _round_up(pl.cdiv(B, 2), sublane)
    else:
        tb = _round_up(B, sublane)

    in_itemsize = jnp.dtype(in_dtype).itemsize
    out_itemsize = jnp.dtype(out_dtype).itemsize
    param_bytes = sum(int(p.size) * jnp.dtype(p.dtype).itemsize for p in flat_params)

    vmem_cap = _vmem_capacity_bytes()
    budget = int(0.85 * vmem_cap)

    def _tile_bytes(tb_):
        moving = 2 * (2 * tb_ * feat * in_itemsize)    # s, t: double-buffered tiles
        moving += 2 * (tb_ * out_dim * out_itemsize)   # out: double-buffered tile
        resident = 2 * param_bytes                     # default double-buffer of params
        act = 2 * tb_ * hidden_pad * 4                 # live f32 activation temporaries
        return moving + resident + act

    # Shrink the batch tile if the explicit VMEM model exceeds the chip budget.
    while tb > sublane and _tile_bytes(tb) > budget:
        tb = max(sublane, _round_up(tb // 2, sublane))

    grid = (pl.cdiv(B, tb),)

    batch_spec = lambda width: pl.BlockSpec((tb, width), lambda i: (i, 0))
    # Constant index_map -> weights/biases stay VMEM-resident across the grid.
    resident_spec = lambda shape: pl.BlockSpec(shape, lambda i: (0, 0))

    in_specs = [batch_spec(feat), batch_spec(feat)]
    in_specs += [resident_spec(p.shape) for p in flat_params]
    out_specs = batch_spec(out_dim)

    flops = sum(2 * B * w.shape[0] * w.shape[1] for w, _ in padded)
    transcendentals = B * (feat + (n_layers - 1) * hidden_pad)
    bytes_accessed = (2 * B * feat * in_itemsize
                      + B * out_dim * out_itemsize
                      + param_bytes)

    vmem_limit = int(min(max(8 << 20, _tile_bytes(tb) + (4 << 20)), budget))

    out = pl.pallas_call(
        functools.partial(_joint_policy_pis_kernel,
                          approximate_gelu=approximate_gelu),
        out_shape=jax.ShapeDtypeStruct((B, out_dim), out_dtype),
        grid=grid,
        in_specs=in_specs,
        out_specs=out_specs,
        compiler_params=pltpu.CompilerParams(
            dimension_semantics=("parallel",),
            vmem_limit_bytes=vmem_limit,
        ),
        cost_estimate=pl.CostEstimate(
            flops=int(flops),
            transcendentals=int(transcendentals),
            bytes_accessed=int(bytes_accessed),
        ),
    )(s_in, t_in, *flat_params)

    return out


def init_params(key, s_dim, s_emb_dim, t_dim, hidden_dim=64, out_dim=None,
                num_layers=2, zero_init=False, dtype=jnp.float32):
    """Deterministic synthetic init (PyTorch nn.Linear-style uniform bounds)."""
    if out_dim is None:
        out_dim = 2 * s_dim
    assert s_emb_dim == t_dim, "state / time embedding dims must match"
    assert s_emb_dim == hidden_dim, "model input width must equal hidden_dim"

    def linear_init(k, fan_in, fan_out):
        kw, kb = jax.random.split(k)
        bound = 1.0 / math.sqrt(fan_in)
        w = jax.random.uniform(kw, (fan_in, fan_out), dtype, -bound, bound)
        b = jax.random.uniform(kb, (1, fan_out), dtype, -bound, bound)
        return w, b

    dims = [hidden_dim] * (num_layers + 1) + [out_dim]
    keys = jax.random.split(key, num_layers + 1)
    params = [linear_init(k, dims[i], dims[i + 1]) for i, k in enumerate(keys)]
    if zero_init:
        w, b = params[-1]
        params[-1] = (jnp.zeros_like(w), jnp.zeros_like(b))
    return params


def _reference_forward(s, t, params):
    h = _gelu(s + t)
    for i, (w, b) in enumerate(params):
        h = h @ w + b
        if i < len(params) - 1:
            h = _gelu(h)
    return h


if __name__ == "__main__":
    # Small shapes consistent with the module's forward:
    # s_emb_dim == t_dim == hidden_dim = 64, out_dim = 2*s_dim = 8.
    s_dim, hidden_dim, num_layers = 4, 64, 2
    s_emb_dim = t_dim_ = hidden_dim
    batch = 32  # split into a 2-step parallel grid (exercises both v7x TCs)

    key = jax.random.PRNGKey(0)
    kp, ks, kt = jax.random.split(key, 3)

    params = init_params(kp, s_dim, s_emb_dim, t_dim_, hidden_dim,
                         num_layers=num_layers)
    s = jax.random.normal(ks, (batch, s_emb_dim), jnp.float32)
    t = jax.random.normal(kt, (batch, t_dim_), jnp.float32)

    ref = _reference_forward(s, t, params)

    # Exact f32 path (bit-level parity with torch nn.GELU()).
    out_f32 = jax.block_until_ready(joint_policy_pis_forward(s, t, params))
    assert out_f32.shape == (batch, 2 * s_dim), out_f32.shape
    assert jnp.allclose(out_f32, ref, atol=1e-4, rtol=1e-5), (
        "f32 mismatch vs reference, max abs err = "
        f"{float(jnp.max(jnp.abs(out_f32 - ref)))}")

    # Reduced-precision path (bf16 inputs/weights, f32 GELU + accumulation).
    out_bf16 = jax.block_until_ready(
        joint_policy_pis_forward(s, t, params, use_bf16=True))
    assert out_bf16.shape == (batch, 2 * s_dim), out_bf16.shape
    assert jnp.allclose(out_bf16, ref, atol=5e-2, rtol=5e-2), (
        "bf16 mismatch vs reference, max abs err = "
        f"{float(jnp.max(jnp.abs(out_bf16 - ref)))}")

    print("KERNEL_OK")
</pallas_src>

<mosaic_0001>
module attributes {stable_mosaic.version = 11 : i64} {
  func.func @_joint_policy_pis_kernel(%arg0: i32, %arg1: memref<16x64xf32, #tpu.memory_space<vmem>>, %arg2: memref<16x64xf32, #tpu.memory_space<vmem>>, %arg3: memref<64x128xf32, #tpu.memory_space<vmem>>, %arg4: memref<1x128xf32, #tpu.memory_space<vmem>>, %arg5: memref<128x128xf32, #tpu.memory_space<vmem>>, %arg6: memref<1x128xf32, #tpu.memory_space<vmem>>, %arg7: memref<128x8xf32, #tpu.memory_space<vmem>>, %arg8: memref<1x8xf32, #tpu.memory_space<vmem>>, %arg9: memref<16x8xf32, #tpu.memory_space<vmem>>) attributes {dimension_semantics = [#tpu.dimension_semantics<parallel>], iteration_bounds = array<i64: 2>, scalar_prefetch = 0 : i64, scratch_operands = 0 : i64, tpu.core_type = #tpu.core_type<tc>, window_params = [{transform_indices = @transform_0, window_bounds = array<i64: 16, 64>}, {transform_indices = @transform_1, window_bounds = array<i64: 16, 64>}, {pipeline_mode = #tpu.pipeline_mode<synchronous>, transform_indices = @transform_2, window_bounds = array<i64: 64, 128>}, {pipeline_mode = #tpu.pipeline_mode<synchronous>, transform_indices = @transform_3, window_bounds = array<i64: 1, 128>}, {pipeline_mode = #tpu.pipeline_mode<synchronous>, transform_indices = @transform_4, window_bounds = array<i64: 128, 128>}, {pipeline_mode = #tpu.pipeline_mode<synchronous>, transform_indices = @transform_5, window_bounds = array<i64: 1, 128>}, {pipeline_mode = #tpu.pipeline_mode<synchronous>, transform_indices = @transform_6, window_bounds = array<i64: 128, 8>}, {pipeline_mode = #tpu.pipeline_mode<synchronous>, transform_indices = @transform_7, window_bounds = array<i64: 1, 8>}, {transform_indices = @transform_8, window_bounds = array<i64: 16, 8>}]} {
    %c0 = arith.constant 0 : index
    %c0_0 = arith.constant 0 : index
    %0 = vector.load %arg1[%c0, %c0_0] : memref<16x64xf32, #tpu.memory_space<vmem>>, vector<16x64xf32>
    %c0_1 = arith.constant 0 : index
    %c0_2 = arith.constant 0 : index
    %1 = vector.load %arg2[%c0_1, %c0_2] : memref<16x64xf32, #tpu.memory_space<vmem>>, vector<16x64xf32>
    %2 = arith.addf %0, %1 : vector<16x64xf32>
    %cst = arith.constant 5.000000e-01 : f32
    %3 = vector.broadcast %cst : f32 to vector<16x64xf32>
    %4 = arith.mulf %3, %2 : vector<16x64xf32>
    %cst_3 = arith.constant 0.707106769 : f32
    %5 = vector.broadcast %cst_3 : f32 to vector<16x64xf32>
    %6 = arith.mulf %2, %5 : vector<16x64xf32>
    %7 = math.erf %6 : vector<16x64xf32>
    %cst_4 = arith.constant 1.000000e+00 : f32
    %8 = vector.broadcast %cst_4 : f32 to vector<16x64xf32>
    %9 = arith.addf %8, %7 : vector<16x64xf32>
    %10 = arith.mulf %4, %9 : vector<16x64xf32>
    %c0_5 = arith.constant 0 : index
    %c0_6 = arith.constant 0 : index
    %11 = vector.load %arg3[%c0_5, %c0_6] : memref<64x128xf32, #tpu.memory_space<vmem>>, vector<64x128xf32>
    %c0_7 = arith.constant 0 : index
    %c0_8 = arith.constant 0 : index
    %12 = vector.load %arg4[%c0_7, %c0_8] : memref<1x128xf32, #tpu.memory_space<vmem>>, vector<1x128xf32>
    %cst_9 = arith.constant dense<0.000000e+00> : vector<16x128xf32>
    %13 = tpu.matmul %10, %11, %cst_9 {dimension_numbers = #tpu.dot_dimension_numbers<[1], [0], [0], [1], [0, 0, 1, 1], [], []>} : vector<16x64xf32>, vector<64x128xf32>, vector<16x128xf32> -> vector<16x128xf32>
    %14 = vector.broadcast %12 : vector<1x128xf32> to vector<16x128xf32>
    %15 = arith.addf %13, %14 : vector<16x128xf32>
    %cst_10 = arith.constant 5.000000e-01 : f32
    %16 = vector.broadcast %cst_10 : f32 to vector<16x128xf32>
    %17 = arith.mulf %16, %15 : vector<16x128xf32>
    %cst_11 = arith.constant 0.707106769 : f32
    %18 = vector.broadcast %cst_11 : f32 to vector<16x128xf32>
    %19 = arith.mulf %15, %18 : vector<16x128xf32>
    %20 = math.erf %19 : vector<16x128xf32>
    %cst_12 = arith.constant 1.000000e+00 : f32
    %21 = vector.broadcast %cst_12 : f32 to vector<16x128xf32>
    %22 = arith.addf %21, %20 : vector<16x128xf32>
    %23 = arith.mulf %17, %22 : vector<16x128xf32>
    %c0_13 = arith.constant 0 : index
    %c0_14 = arith.constant 0 : index
    %24 = vector.load %arg5[%c0_13, %c0_14] : memref<128x128xf32, #tpu.memory_space<vmem>>, vector<128x128xf32>
    %c0_15 = arith.constant 0 : index
    %c0_16 = arith.constant 0 : index
    %25 = vector.load %arg6[%c0_15, %c0_16] : memref<1x128xf32, #tpu.memory_space<vmem>>, vector<1x128xf32>
    %cst_17 = arith.constant dense<0.000000e+00> : vector<16x128xf32>
    %26 = tpu.matmul %23, %24, %cst_17 {dimension_numbers = #tpu.dot_dimension_numbers<[1], [0], [0], [1], [0, 0, 1, 1], [], []>} : vector<16x128xf32>, vector<128x128xf32>, vector<16x128xf32> -> vector<16x128xf32>
    %27 = vector.broadcast %25 : vector<1x128xf32> to vector<16x128xf32>
    %28 = arith.addf %26, %27 : vector<16x128xf32>
    %cst_18 = arith.constant 5.000000e-01 : f32
    %29 = vector.broadcast %cst_18 : f32 to vector<16x128xf32>
    %30 = arith.mulf %29, %28 : vector<16x128xf32>
    %cst_19 = arith.constant 0.707106769 : f32
    %31 = vector.broadcast %cst_19 : f32 to vector<16x128xf32>
    %32 = arith.mulf %28, %31 : vector<16x128xf32>
    %33 = math.erf %32 : vector<16x128xf32>
    %cst_20 = arith.constant 1.000000e+00 : f32
    %34 = vector.broadcast %cst_20 : f32 to vector<16x128xf32>
    %35 = arith.addf %34, %33 : vector<16x128xf32>
    %36 = arith.mulf %30, %35 : vector<16x128xf32>
    %c0_21 = arith.constant 0 : index
    %c0_22 = arith.constant 0 : index
    %37 = vector.load %arg7[%c0_21, %c0_22] : memref<128x8xf32, #tpu.memory_space<vmem>>, vector<128x8xf32>
    %c0_23 = arith.constant 0 : index
    %c0_24 = arith.constant 0 : index
    %38 = vector.load %arg8[%c0_23, %c0_24] : memref<1x8xf32, #tpu.memory_space<vmem>>, vector<1x8xf32>
    %cst_25 = arith.constant dense<0.000000e+00> : vector<16x8xf32>
    %39 = tpu.matmul %36, %37, %cst_25 {dimension_numbers = #tpu.dot_dimension_numbers<[1], [0], [0], [1], [0, 0, 1, 1], [], []>} : vector<16x128xf32>, vector<128x8xf32>, vector<16x8xf32> -> vector<16x8xf32>
    %40 = vector.broadcast %38 : vector<1x8xf32> to vector<16x8xf32>
    %41 = arith.addf %39, %40 : vector<16x8xf32>
    %c0_26 = arith.constant 0 : index
    %c0_27 = arith.constant 0 : index
    %42 = vector.load %arg9[%c0_26, %c0_27] : memref<16x8xf32, #tpu.memory_space<vmem>>, vector<16x8xf32>
    tpu.vector_store %arg9[%c0_26, %c0_27], %41 {strides = array<i32>} : memref<16x8xf32, #tpu.memory_space<vmem>>, vector<16x8xf32>,
    return
  }
  func.func @transform_0(%arg0: i32) -> (i32, i32) {
    %c0_i32 = arith.constant 0 : i32
    %c0_i32_0 = arith.constant 0 : i32
    return %arg0, %c0_i32 : i32, i32
  }
  func.func @transform_1(%arg0: i32) -> (i32, i32) {
    %c0_i32 = arith.constant 0 : i32
    %c0_i32_0 = arith.constant 0 : i32
    return %arg0, %c0_i32 : i32, i32
  }
  func.func @transform_2(%arg0: i32) -> (i32, i32) {
    %c0_i32 = arith.constant 0 : i32
    %c0_i32_0 = arith.constant 0 : i32
    %c0_i32_1 = arith.constant 0 : i32
    return %c0_i32, %c0_i32_0 : i32, i32
  }
  func.func @transform_3(%arg0: i32) -> (i32, i32) {
    %c0_i32 = arith.constant 0 : i32
    %c0_i32_0 = arith.constant 0 : i32
    %c0_i32_1 = arith.constant 0 : i32
    return %c0_i32, %c0_i32_0 : i32, i32
  }
  func.func @transform_4(%arg0: i32) -> (i32, i32) {
    %c0_i32 = arith.constant 0 : i32
    %c0_i32_0 = arith.constant 0 : i32
    %c0_i32_1 = arith.constant 0 : i32
    return %c0_i32, %c0_i32_0 : i32, i32
  }
  func.func @transform_5(%arg0: i32) -> (i32, i32) {
    %c0_i32 = arith.constant 0 : i32
    %c0_i32_0 = arith.constant 0 : i32
    %c0_i32_1 = arith.constant 0 : i32
    return %c0_i32, %c0_i32_0 : i32, i32
  }
  func.func @transform_6(%arg0: i32) -> (i32, i32) {
    %c0_i32 = arith.constant 0 : i32
    %c0_i32_0 = arith.constant 0 : i32
    %c0_i32_1 = arith.constant 0 : i32
    return %c0_i32, %c0_i32_0 : i32, i32
  }
  func.func @transform_7(%arg0: i32) -> (i32, i32) {
    %c0_i32 = arith.constant 0 : i32
    %c0_i32_0 = arith.constant 0 : i32
    %c0_i32_1 = arith.constant 0 : i32
    return %c0_i32, %c0_i32_0 : i32, i32
  }
  func.func @transform_8(%arg0: i32) -> (i32, i32) {
    %c0_i32 = arith.constant 0 : i32
    %c0_i32_0 = arith.constant 0 : i32
    return %arg0, %c0_i32 : i32, i32
  }
}

</mosaic_0001>

<llo_original>
// kernel: tpu_custom_call.1
$region0: #{tpu_custom_call.1}
  #allocation0 [shape = 'u32[]', space=smem, size = 0x4, offset = 0x4, fixed_abs, tag = 'smem constant byte address 0x4 - core index']
  #allocation1 [shape = 'u32[72,128]{1,0:T(1,128)}', space=vmem, size = 0x9000, scoped, tag = 'internal scratch']
  %s0 = inlined_call_operand.hbm [shape: f32[32,64], index: 0, kind: input, shape index: {}]
  %s1 = inlined_call_operand.hbm [shape: f32[32,64], index: 1, kind: input, shape index: {}]
  %s2 = inlined_call_operand.hbm [shape: f32[64,128], index: 2, kind: input, shape index: {}]
  %s3 = inlined_call_operand.vmem [shape: f32[1,128], index: 3, kind: input, shape index: {}]
  %s4 = inlined_call_operand.vmem [shape: f32[128,128], index: 4, kind: input, shape index: {}]
  %s5 = inlined_call_operand.vmem [shape: f32[1,128], index: 5, kind: input, shape index: {}]
  %s6 = inlined_call_operand.vmem [shape: f32[128,8], index: 6, kind: input, shape index: {}]
  %s7 = inlined_call_operand.vmem [shape: f32[1,8], index: 7, kind: input, shape index: {}]
  %s8 = inlined_call_operand.vmem [shape: f32[32,8], index: 8, kind: output, shape index: {}]
  %s9 = sld [smem:[#allocation0]]
  $region77: #{tpu_custom_call.1} parent=0
    _
  %s11 = ssub.s32 1, %s9
  %s12 = scalar_select 0, %s11, %s9
  $region1: #{tpu_custom_call.1} parent=0
    #allocation2 [shape = 'u8[16384]{0}', space=vmem, size = 0x4000, scoped, tag = 'input window, operand 0']
    #allocation3 [shape = 's32[2]{0}', space=sflag, size = 0x8, scoped, tag = 'scoped memory for tpu_custom_call.1']
    #allocation4 [shape = 'u8[16384]{0}', space=vmem, size = 0x4000, scoped, tag = 'input window, operand 1']
    #allocation5 [shape = 's32[2]{0}', space=sflag, size = 0x8, scoped, tag = 'scoped memory for tpu_custom_call.1']
    #allocation6 [shape = 'u8[32768]{0}', space=vmem, size = 0x8000, scoped, tag = 'input window, operand 2, single buffered']
    %13 = vsyncpa [#allocation3], 0
    %s14 = scalar_lea.sflag [#allocation3], 1
    %15 = vsyncpa %s14, 0
    %16 = vsyncpa [#allocation5], 0
    %s17 = scalar_lea.sflag [#allocation5], 1
    %18 = vsyncpa %s17, 0
    loop: start=0, step=1, limit=4
    $region2: #{tpu_custom_call.1} parent=1 // loop_pre_header
      _
    $region3: #{tpu_custom_call.1} parent=1 // loop_header
      %s20 = sphi 0, %s24
      %p21 = scmp.ge.s32.totalorder %s20, 4
      %s30 = sphi 0, %s32
      %s33 = sphi 0, %s30
      %s34 = sphi 0, %s33
      %s50 = sphi 0, %s34
      %s56 = sphi 0, %s58
      %s59 = sphi 0, %s56
      %s60 = sphi 0, %s59
      %s76 = sphi 0, %s60
      %s80 = sphi 0, %s80
      %s82 = sphi 0, %s80
      %s83 = sphi 0, %s82
      %s97 = sphi 0, %s83
      %s101 = sphi 0, %s101
      %s103 = sphi 0, %s101
      %s104 = sphi 0, %s103
      %s118 = sphi 0, %s104
      %s122 = sphi 0, %s122
      %s124 = sphi 0, %s122
      %s125 = sphi 0, %s124
      %s139 = sphi 0, %s125
      %s143 = sphi 0, %s143
      %s145 = sphi 0, %s143
      %s146 = sphi 0, %s145
      %s160 = sphi 0, %s146
      %s164 = sphi 0, %s164
      %s166 = sphi 0, %s164
      %s167 = sphi 0, %s166
      %s181 = sphi 0, %s167
      %s185 = sphi 0, %s185
      %s187 = sphi 0, %s185
      %s188 = sphi 0, %s187
      %s202 = sphi 0, %s188
      %s208 = sphi 0, %s210
      %s211 = sphi 0, %s208
      %s212 = sphi 0, %s211
      %s228 = sphi 0, %s212
    $region4: #{tpu_custom_call.1} parent=1 // loop_header_branch
      %23 = sbr.rel (%p21) target = $region8
    $region5: #{tpu_custom_call.1} parent=1 // loop_body
      %s25 = ssub.s32 %s20, 1
      %s26 = ssub.s32 %s20, 2
      %s27 = sadd.s32 %s20, 1
      %s28 = ssub.s32 %s20, %s27
      %p29 = scmp.eq.s32.totalorder %s28, 0
      %s31 = sadd.s32 %s30, 1
      %s32 = scalar_select %p29, %s30, %s31
      %p35 = pneg %p29
      %p36 = scmp.eq.s32.totalorder %s20, 1
      %p37 = por %p35, %p36
      %p38 = scmp.ne.s32.totalorder %s30, %s33
      %p39 = scmp.eq.s32.totalorder %s20, 0
      %p40 = por %p38, %p39
      %p41 = scmp.ne.s32.totalorder %s30, %s33
      %p42 = scmp.eq.s32.totalorder %s25, 1
      %p43 = por %p41, %p42
      %p44 = scmp.ne.s32.totalorder %s33, %s34
      %p45 = scmp.eq.s32.totalorder %s25, 0
      %p46 = por %p44, %p45
      %p47 = scmp.ne.s32.totalorder %s33, %s34
      %p48 = scmp.eq.s32.totalorder %s26, 1
      %p49 = por %p47, %p48
      %p51 = scmp.ne.s32.totalorder %s34, %s50
      %p52 = scmp.eq.s32.totalorder %s26, 0
      %p53 = por %p51, %p52
      %s54 = ssub.s32 %s20, %s27
      %p55 = scmp.eq.s32.totalorder %s54, 0
      %s57 = sadd.s32 %s56, 1
      %s58 = scalar_select %p55, %s56, %s57
      %p61 = pneg %p55
      %p62 = scmp.eq.s32.totalorder %s20, 1
      %p63 = por %p61, %p62
      %p64 = scmp.ne.s32.totalorder %s56, %s59
      %p65 = scmp.eq.s32.totalorder %s20, 0
      %p66 = por %p64, %p65
      %p67 = scmp.ne.s32.totalorder %s56, %s59
      %p68 = scmp.eq.s32.totalorder %s25, 1
      %p69 = por %p67, %p68
      %p70 = scmp.ne.s32.totalorder %s59, %s60
      %p71 = scmp.eq.s32.totalorder %s25, 0
      %p72 = por %p70, %p71
      %p73 = scmp.ne.s32.totalorder %s59, %s60
      %p74 = scmp.eq.s32.totalorder %s26, 1
      %p75 = por %p73, %p74
      %p77 = scmp.ne.s32.totalorder %s60, %s76
      %p78 = scmp.eq.s32.totalorder %s26, 0
      %p79 = por %p77, %p78
      %s81 = sadd.s32 %s80, 1
      %p84 = scmp.eq.s32.totalorder %s20, 1
      %p85 = scmp.ne.s32.totalorder %s80, %s82
      %p86 = scmp.eq.s32.totalorder %s20, 0
      %p87 = por %p85, %p86
      %p88 = scmp.ne.s32.totalorder %s80, %s82
      %p89 = scmp.eq.s32.totalorder %s25, 1
      %p90 = por %p88, %p89
      %p91 = scmp.ne.s32.totalorder %s82, %s83
      %p92 = scmp.eq.s32.totalorder %s25, 0
      %p93 = por %p91, %p92
      %p94 = scmp.ne.s32.totalorder %s82, %s83
      %p95 = scmp.eq.s32.totalorder %s26, 1
      %p96 = por %p94, %p95
      %p98 = scmp.ne.s32.totalorder %s83, %s97
      %p99 = scmp.eq.s32.totalorder %s26, 0
      %p100 = por %p98, %p99
      %s102 = sadd.s32 %s101, 1
      %p105 = scmp.eq.s32.totalorder %s20, 1
      %p106 = scmp.ne.s32.totalorder %s101, %s103
      %p107 = scmp.eq.s32.totalorder %s20, 0
      %p108 = por %p106, %p107
      %p109 = scmp.ne.s32.totalorder %s101, %s103
      %p110 = scmp.eq.s32.totalorder %s25, 1
      %p111 = por %p109, %p110
      %p112 = scmp.ne.s32.totalorder %s103, %s104
      %p113 = scmp.eq.s32.totalorder %s25, 0
      %p114 = por %p112, %p113
      %p115 = scmp.ne.s32.totalorder %s103, %s104
      %p116 = scmp.eq.s32.totalorder %s26, 1
      %p117 = por %p115, %p116
      %p119 = scmp.ne.s32.totalorder %s104, %s118
      %p120 = scmp.eq.s32.totalorder %s26, 0
      %p121 = por %p119, %p120
      %s123 = sadd.s32 %s122, 1
      %p126 = scmp.eq.s32.totalorder %s20, 1
      %p127 = scmp.ne.s32.totalorder %s122, %s124
      %p128 = scmp.eq.s32.totalorder %s20, 0
      %p129 = por %p127, %p128
      %p130 = scmp.ne.s32.totalorder %s122, %s124
      %p131 = scmp.eq.s32.totalorder %s25, 1
      %p132 = por %p130, %p131
      %p133 = scmp.ne.s32.totalorder %s124, %s125
      %p134 = scmp.eq.s32.totalorder %s25, 0
      %p135 = por %p133, %p134
      %p136 = scmp.ne.s32.totalorder %s124, %s125
      %p137 = scmp.eq.s32.totalorder %s26, 1
      %p138 = por %p136, %p137
      %p140 = scmp.ne.s32.totalorder %s125, %s139
      %p141 = scmp.eq.s32.totalorder %s26, 0
      %p142 = por %p140, %p141
      %s144 = sadd.s32 %s143, 1
      %p147 = scmp.eq.s32.totalorder %s20, 1
      %p148 = scmp.ne.s32.totalorder %s143, %s145
      %p149 = scmp.eq.s32.totalorder %s20, 0
      %p150 = por %p148, %p149
      %p151 = scmp.ne.s32.totalorder %s143, %s145
      %p152 = scmp.eq.s32.totalorder %s25, 1
      %p153 = por %p151, %p152
      %p154 = scmp.ne.s32.totalorder %s145, %s146
      %p155 = scmp.eq.s32.totalorder %s25, 0
      %p156 = por %p154, %p155
      %p157 = scmp.ne.s32.totalorder %s145, %s146
      %p158 = scmp.eq.s32.totalorder %s26, 1
      %p159 = por %p157, %p158
      %p161 = scmp.ne.s32.totalorder %s146, %s160
      %p162 = scmp.eq.s32.totalorder %s26, 0
      %p163 = por %p161, %p162
      %s165 = sadd.s32 %s164, 1
      %p168 = scmp.eq.s32.totalorder %s20, 1
      %p169 = scmp.ne.s32.totalorder %s164, %s166
      %p170 = scmp.eq.s32.totalorder %s20, 0
      %p171 = por %p169, %p170
      %p172 = scmp.ne.s32.totalorder %s164, %s166
      %p173 = scmp.eq.s32.totalorder %s25, 1
      %p174 = por %p172, %p173
      %p175 = scmp.ne.s32.totalorder %s166, %s167
      %p176 = scmp.eq.s32.totalorder %s25, 0
      %p177 = por %p175, %p176
      %p178 = scmp.ne.s32.totalorder %s166, %s167
      %p179 = scmp.eq.s32.totalorder %s26, 1
      %p180 = por %p178, %p179
      %p182 = scmp.ne.s32.totalorder %s167, %s181
      %p183 = scmp.eq.s32.totalorder %s26, 0
      %p184 = por %p182, %p183
      %s186 = sadd.s32 %s185, 1
      %p189 = scmp.eq.s32.totalorder %s20, 1
      %p190 = scmp.ne.s32.totalorder %s185, %s187
      %p191 = scmp.eq.s32.totalorder %s20, 0
      %p192 = por %p190, %p191
      %p193 = scmp.ne.s32.totalorder %s185, %s187
      %p194 = scmp.eq.s32.totalorder %s25, 1
      %p195 = por %p193, %p194
      %p196 = scmp.ne.s32.totalorder %s187, %s188
      %p197 = scmp.eq.s32.totalorder %s25, 0
      %p198 = por %p196, %p197
      %p199 = scmp.ne.s32.totalorder %s187, %s188
      %p200 = scmp.eq.s32.totalorder %s26, 1
      %p201 = por %p199, %p200
      %p203 = scmp.ne.s32.totalorder %s188, %s202
      %p204 = scmp.eq.s32.totalorder %s26, 0
      %p205 = por %p203, %p204
      %s206 = ssub.s32 %s20, %s27
      %p207 = scmp.eq.s32.totalorder %s206, 0
      %s209 = sadd.s32 %s208, 1
      %s210 = scalar_select %p207, %s208, %s209
      %p213 = pneg %p207
      %p214 = scmp.eq.s32.totalorder %s20, 1
      %p215 = por %p213, %p214
      %p216 = scmp.ne.s32.totalorder %s208, %s211
      %p217 = scmp.eq.s32.totalorder %s20, 0
      %p218 = por %p216, %p217
      %p219 = scmp.ne.s32.totalorder %s208, %s211
      %p220 = scmp.eq.s32.totalorder %s25, 1
      %p221 = por %p219, %p220
      %p222 = scmp.ne.s32.totalorder %s211, %s212
      %p223 = scmp.eq.s32.totalorder %s25, 0
      %p224 = por %p222, %p223
      %p225 = scmp.ne.s32.totalorder %s211, %s212
      %p226 = scmp.eq.s32.totalorder %s26, 1
      %p227 = por %p225, %p226
      %p229 = scmp.ne.s32.totalorder %s212, %s228
      %p230 = scmp.eq.s32.totalorder %s26, 0
      %p231 = por %p229, %p230
      %p232 = scmp.le.s32.totalorder 1, %s20
      %p233 = scmp.lt.s32.totalorder %s20, 3
      %p234 = pnand %p232, %p233
      %p235 = pneg %p234
      // Predicated region
      $region9: #{tpu_custom_call.1} parent=5 // pred_check
        _
      $region10: #{tpu_custom_call.1} parent=5 // pred_check_branch
        %237 = sbr.rel (%p234) target = $region12
      $region11: #{tpu_custom_call.1} parent=5 // pred_region
        %s238 = ssub.s32 %s20, 1
        // Predicated region
        $region13: #{tpu_custom_call.1} parent=11 // pred_check
          %p239 = pneg %p93
        $region14: #{tpu_custom_call.1} parent=11 // pred_check_branch
          %241 = sbr.rel (%p239) target = $region16
        $region15: #{tpu_custom_call.1} parent=11 // pred_region
          %243 = vsyncadd [#allocation5], 0
          %s244 = sshll.u32 %s2, 4
          %s245 = int_to_ptr.hbm [resolvable:$true] %s244
          %s246 = sshll.u32 [#allocation6], 4
          %s247 = int_to_ptr.vmem [resolvable:$true] %s246
          %252 = dma.hbm_to_vmem [thread:$0]  %s245, 1024, %s247, [#allocation5], 128, 128, 8
        $region16: #{tpu_custom_call.1} parent=11 // pred_fallthru
          _
        // Predicated region
        $region17: #{tpu_custom_call.1} parent=11 // pred_check
          %p253 = pneg %p114
        $region18: #{tpu_custom_call.1} parent=11 // pred_check_branch
          %255 = sbr.rel (%p253) target = $region20
        $region19: #{tpu_custom_call.1} parent=11 // pred_region
          _
        $region20: #{tpu_custom_call.1} parent=11 // pred_fallthru
          _
        // Predicated region
        $region21: #{tpu_custom_call.1} parent=11 // pred_check
          %p256 = pneg %p135
        $region22: #{tpu_custom_call.1} parent=11 // pred_check_branch
          %258 = sbr.rel (%p256) target = $region24
        $region23: #{tpu_custom_call.1} parent=11 // pred_region
          _
        $region24: #{tpu_custom_call.1} parent=11 // pred_fallthru
          _
        // Predicated region
        $region25: #{tpu_custom_call.1} parent=11 // pred_check
          %p259 = pneg %p156
        $region26: #{tpu_custom_call.1} parent=11 // pred_check_branch
          %261 = sbr.rel (%p259) target = $region28
        $region27: #{tpu_custom_call.1} parent=11 // pred_region
          _
        $region28: #{tpu_custom_call.1} parent=11 // pred_fallthru
          _
        // Predicated region
        $region29: #{tpu_custom_call.1} parent=11 // pred_check
          %p262 = pneg %p177
        $region30: #{tpu_custom_call.1} parent=11 // pred_check_branch
          %264 = sbr.rel (%p262) target = $region32
        $region31: #{tpu_custom_call.1} parent=11 // pred_region
          _
        $region32: #{tpu_custom_call.1} parent=11 // pred_fallthru
          _
        // Predicated region
        $region33: #{tpu_custom_call.1} parent=11 // pred_check
          %p265 = pneg %p198
        $region34: #{tpu_custom_call.1} parent=11 // pred_check_branch
          %267 = sbr.rel (%p265) target = $region36
        $region35: #{tpu_custom_call.1} parent=11 // pred_region
          _
        $region36: #{tpu_custom_call.1} parent=11 // pred_fallthru
          _
      $region12: #{tpu_custom_call.1} parent=5 // pred_fallthru
        _
      %p268 = scmp.lt.s32.totalorder %s20, 2
      // Predicated region
      $region37: #{tpu_custom_call.1} parent=5 // pred_check
        %p269 = pneg %p268
      $region38: #{tpu_custom_call.1} parent=5 // pred_check_branch
        %271 = sbr.rel (%p269) target = $region40
      $region39: #{tpu_custom_call.1} parent=5 // pred_region
        // Predicated region
        $region41: #{tpu_custom_call.1} parent=39 // pred_check
          %p272 = pneg %p40
        $region42: #{tpu_custom_call.1} parent=39 // pred_check_branch
          %274 = sbr.rel (%p272) target = $region44
        $region43: #{tpu_custom_call.1} parent=39 // pred_region
          %s275 = sand.u32 %s30, 1
          %s276 = scalar_lea.sflag [#allocation3], %s275
          %s277 = sand.u32 %s30, 1
          %s278 = smul.addr %s277, 16
          %s279 = scalar_lea.vmem [#allocation2], %s278
          %s280 = smul.u32 2, %s20
          %282 = vsyncadd %s276, 0
          %s283 = smul.addr %s280, 8
          %s284 = scalar_lea.hbm %s0, %s283
          %s285 = sshll.u32 %s284, 4
          %s286 = int_to_ptr.hbm [resolvable:$true] %s285
          %s287 = sshll.u32 %s279, 4
          %s288 = int_to_ptr.vmem [resolvable:$true] %s287
          %293 = dma.hbm_to_vmem [thread:$0]  %s286, 256, %s288, %s276, 128, 128, 8
        $region44: #{tpu_custom_call.1} parent=39 // pred_fallthru
          _
        // Predicated region
        $region45: #{tpu_custom_call.1} parent=39 // pred_check
          %p294 = pneg %p66
        $region46: #{tpu_custom_call.1} parent=39 // pred_check_branch
          %296 = sbr.rel (%p294) target = $region48
        $region47: #{tpu_custom_call.1} parent=39 // pred_region
          %s297 = sand.u32 %s20, 1
          %s298 = scalar_lea.sflag [#allocation5], %s297
          %s299 = sand.u32 %s56, 1
          %s300 = smul.addr %s299, 16
          %s301 = scalar_lea.vmem [#allocation4], %s300
          %s302 = smul.u32 2, %s20
          %304 = vsyncadd %s298, 0
          %s305 = smul.addr %s302, 8
          %s306 = scalar_lea.hbm %s1, %s305
          %s307 = sshll.u32 %s306, 4
          %s308 = int_to_ptr.hbm [resolvable:$true] %s307
          %s309 = sshll.u32 %s301, 4
          %s310 = int_to_ptr.vmem [resolvable:$true] %s309
          %315 = dma.hbm_to_vmem [thread:$0]  %s308, 256, %s310, %s298, 128, 128, 8
        $region48: #{tpu_custom_call.1} parent=39 // pred_fallthru
          _
      $region40: #{tpu_custom_call.1} parent=5 // pred_fallthru
        _
      %p316 = scmp.le.s32.totalorder 1, %s20
      %p317 = scmp.lt.s32.totalorder %s20, 3
      %p318 = pnand %p316, %p317
      %p319 = pneg %p318
      // Predicated region
      $region49: #{tpu_custom_call.1} parent=5 // pred_check
        _
      $region50: #{tpu_custom_call.1} parent=5 // pred_check_branch
        %321 = sbr.rel (%p318) target = $region52
      $region51: #{tpu_custom_call.1} parent=5 // pred_region
        %s322 = ssub.s32 %s20, 1
        %s323 = sand.u32 %s33, 1
        %s324 = scalar_lea.sflag [#allocation3], %s323
        %s325 = sand.u32 %s33, 1
        %s326 = smul.addr %s325, 16
        %s327 = scalar_lea.vmem [#allocation2], %s326
        // Predicated region
        $region53: #{tpu_custom_call.1} parent=51 // pred_check
          %p328 = pneg %p46
        $region54: #{tpu_custom_call.1} parent=51 // pred_check_branch
          %330 = sbr.rel (%p328) target = $region56
        $region55: #{tpu_custom_call.1} parent=51 // pred_region
          %332 = dma.done %s324, 256
        $region56: #{tpu_custom_call.1} parent=51 // pred_fallthru
          _
        %s333 = sand.u32 %s25, 1
        %s334 = scalar_lea.sflag [#allocation5], %s333
        %s335 = sand.u32 %s59, 1
        %s336 = smul.addr %s335, 16
        %s337 = scalar_lea.vmem [#allocation4], %s336
        // Predicated region
        $region57: #{tpu_custom_call.1} parent=51 // pred_check
          %p338 = pneg %p72
        $region58: #{tpu_custom_call.1} parent=51 // pred_check_branch
          %340 = sbr.rel (%p338) target = $region60
        $region59: #{tpu_custom_call.1} parent=51 // pred_region
          %342 = dma.done %s334, 256
        $region60: #{tpu_custom_call.1} parent=51 // pred_fallthru
          _
        // Predicated region
        $region61: #{tpu_custom_call.1} parent=51 // pred_check
          %p343 = pneg %p93
        $region62: #{tpu_custom_call.1} parent=51 // pred_check_branch
          %345 = sbr.rel (%p343) target = $region64
        $region63: #{tpu_custom_call.1} parent=51 // pred_region
          %347 = dma.done [#allocation5], 1024
        $region64: #{tpu_custom_call.1} parent=51 // pred_fallthru
          _
        %s348 = sand.u32 %s33, 1
        %s349 = scalar_lea.sflag [#allocation3], %s348
        %s350 = sand.u32 %s33, 1
        %s351 = smul.addr %s350, 16
        %s352 = scalar_lea.vmem [#allocation2], %s351
        %p353 = pneg %p46
        %p354 = pneg %p43
        %s355 = sand.u32 %s25, 1
        %s356 = scalar_lea.sflag [#allocation5], %s355
        %s357 = sand.u32 %s59, 1
        %s358 = smul.addr %s357, 16
        %s359 = scalar_lea.vmem [#allocation4], %s358
        %p360 = pneg %p72
        %p361 = pneg %p69
        %p362 = pneg %p93
        %p363 = pneg %p90
        %p364 = pneg %p114
        %p365 = pneg %p111
        %p366 = pneg %p135
        %p367 = pneg %p132
        %p368 = pneg %p156
        %p369 = pneg %p153
        %p370 = pneg %p177
        %p371 = pneg %p174
        %p372 = pneg %p198
        %p373 = pneg %p195
        %p374 = pneg %p224
        %p375 = pneg %p221
        %s376 = smul.u32 2, %s25
        %p377 = scmp.lt.s32.totalorder %s376, 3
        %s378 = scalar_select %p377, %s376, 3
        %s379 = smul.addr %s378, 8
        %s380 = scalar_lea.vmem %s8, %s379
        %s381 = smul.u32 2, %s25
        %s382 = smul.u32 2, %s25
        %s383 = smul.u32 2, %s25
        %p384 = scmp.lt.s32.totalorder %s383, 3
        %s385 = scalar_select %p384, %s383, 3
        %s386 = smul.addr %s385, 8
        %s387 = scalar_lea.vmem %s8, %s386
        %s388 = smul.u32 2, %s25
        %v389 = vld [vmem:[%s327] sm:$0xff]
        %v390 = vld [vmem:[%s327 + $0x8] sm:$0xff]
        %v391 = vld [vmem:[%s337] sm:$0xff]
        %v392 = vld [vmem:[%s337 + $0x8] sm:$0xff]
        %v393 = vadd.f32 %v389, %v391
        %v394 = vadd.f32 %v390, %v392
        %v395 = vmul.f32 %v393, 0.5
        %v396 = vmul.f32 %v394, 0.5
        %v397 = vmul.f32 %v393, 0.70710677
        %v398 = vmul.f32 %v394, 0.70710677
        %v399 = vmul.f32 %v397, %v397
        %v400 = vmin.f32 16.0, %v399
        %v401 = vmul.f32 %v400, 2.1237322e-06
        %v402 = vadd.f32 %v401, 0.00028619796
        %v403 = vmul.f32 %v400, %v402
        %v404 = vadd.f32 %v403, 0.0036580483
        %v405 = vmul.f32 %v400, %v404
        %v406 = vadd.f32 %v405, 0.05243302
        %v407 = vmul.f32 %v400, %v406
        %v408 = vadd.f32 %v407, 0.18741608
        %v409 = vmul.f32 %v400, %v408
        %v410 = vadd.f32 %v409, 1.1283791
        %v411 = vmul.f32 %v397, %v410
        %v412 = vmul.f32 %v400, 3.8918573e-05
        %v413 = vadd.f32 %v412, 0.001143296
        %v414 = vmul.f32 %v400, %v413
        %v415 = vadd.f32 %v414, 0.014752088
        %v416 = vmul.f32 %v400, %v415
        %v417 = vadd.f32 %v416, 0.112945676
        %v418 = vmul.f32 %v400, %v417
        %v419 = vadd.f32 %v418, 0.4994258
        %v420 = vmul.f32 %v400, %v419
        %v421 = vadd.f32 %v420, 1.0
        %v422 = vrcp.pop %v421
        %v423 = vmul.f32 %v421, %v422
        %v424 = vsub.f32 1.0, %v423
        %v425 = vmul.f32 %v422, %v424
        %v426 = vadd.f32 %v422, %v425
        %vm427 = vweird.f32 %v421
        %vm428 = vweird.f32 %v422
        %vm429 = vmor %vm427, %vm428
        %v430 = vsel %vm429, %v422, %v426
        %v431 = vand.u32 2147483647, %v421
        %vm432 = vcmp.eq.f32.partialorder %v431, 8.507059e+37
        %v433 = vand.u32 %v421, 2147483648
        %v434 = vor.u32 1.1754944e-38, %v433
        %v435 = vsel %vm432, %v434, %v430
        %v436 = vmul.f32 %v411, %v435
        %v437 = vmin.f32 %v436, 1.0
        %v438 = vmax.f32 %v437, -1.0
        %v439 = vmul.f32 %v398, %v398
        %v440 = vmin.f32 16.0, %v439
        %v441 = vmul.f32 %v440, 2.1237322e-06
        %v442 = vadd.f32 %v441, 0.00028619796
        %v443 = vmul.f32 %v440, %v442
        %v444 = vadd.f32 %v443, 0.0036580483
        %v445 = vmul.f32 %v440, %v444
        %v446 = vadd.f32 %v445, 0.05243302
        %v447 = vmul.f32 %v440, %v446
        %v448 = vadd.f32 %v447, 0.18741608
        %v449 = vmul.f32 %v440, %v448
        %v450 = vadd.f32 %v449, 1.1283791
        %v451 = vmul.f32 %v398, %v450
        %v452 = vmul.f32 %v440, 3.8918573e-05
        %v453 = vadd.f32 %v452, 0.001143296
        %v454 = vmul.f32 %v440, %v453
        %v455 = vadd.f32 %v454, 0.014752088
        %v456 = vmul.f32 %v440, %v455
        %v457 = vadd.f32 %v456, 0.112945676
        %v458 = vmul.f32 %v440, %v457
        %v459 = vadd.f32 %v458, 0.4994258
        %v460 = vmul.f32 %v440, %v459
        %v461 = vadd.f32 %v460, 1.0
        %v462 = vrcp.pop %v461
        %v463 = vmul.f32 %v461, %v462
        %v464 = vsub.f32 1.0, %v463
        %v465 = vmul.f32 %v462, %v464
        %v466 = vadd.f32 %v462, %v465
        %vm467 = vweird.f32 %v461
        %vm468 = vweird.f32 %v462
        %vm469 = vmor %vm467, %vm468
        %v470 = vsel %vm469, %v462, %v466
        %v471 = vand.u32 2147483647, %v461
        %vm472 = vcmp.eq.f32.partialorder %v471, 8.507059e+37
        %v473 = vand.u32 %v461, 2147483648
        %v474 = vor.u32 1.1754944e-38, %v473
        %v475 = vsel %vm472, %v474, %v470
        %v476 = vmul.f32 %v451, %v475
        %v477 = vmin.f32 %v476, 1.0
        %v478 = vmax.f32 %v477, -1.0
        %v479 = vadd.f32 %v438, 1.0
        %v480 = vadd.f32 %v478, 1.0
        %v481 = vmul.f32 %v395, %v479
        %v482 = vmul.f32 %v396, %v480
        %v483 = vld [vmem:[#allocation6] sm:$0xff]
        %v484 = vld [vmem:[#allocation6 + $0x8] sm:$0xff]
        %v485 = vld [vmem:[#allocation6 + $0x10] sm:$0xff]
        %v486 = vld [vmem:[#allocation6 + $0x18] sm:$0xff]
        %v487 = vld [vmem:[#allocation6 + $0x20] sm:$0xff]
        %v488 = vld [vmem:[#allocation6 + $0x28] sm:$0xff]
        %v489 = vld [vmem:[#allocation6 + $0x30] sm:$0xff]
        %v490 = vld [vmem:[#allocation6 + $0x38] sm:$0xff]
        %v491 = vld [vmem:[%s3] sm:$0x1]
        %v493 = vperm.slane %v491, 0
        %vm495 = vcmask 523264
        %v497 = vsel %vm495, %v481, 0
        %v500 = vsel %vm495, %v482, 0
        %502 = vmatpush.msra.mxu0 0.0
        %503 = vmatpush.msra.mxu0 0.0
        %504 = vmatpush.msra.mxu0 0.0
        %505 = vmatpush.msra.mxu0 0.0
        %506 = vmatpush.msra.mxu0 0.0
        %507 = vmatpush.msra.mxu0 0.0
        %508 = vmatpush.msra.mxu0 0.0
        %509 = vmatpush.msra.mxu0 0.0
        %510 = vmatpush.msra.mxu0 %v490
        %511 = vmatpush.msra.mxu0 %v489
        %512 = vmatpush.msra.mxu0 %v488
        %513 = vmatpush.msra.mxu0 %v487
        %514 = vmatpush.msra.mxu0 %v486
        %515 = vmatpush.msra.mxu0 %v485
        %516 = vmatpush.msra.mxu0 %v484
        %517 = vmatpush.msra.mxu0 %v483
        %518 = vmatmul.f32.gmra.mxu0 %v497
        %v519 = vpop.f32.mrf.mxu0
        %v520 = vadd.f32 %v493, %v519
        %521 = vmatmul.f32.gmra.mxu0 %v500
        %v522 = vpop.f32.mrf.mxu0
        %v523 = vadd.f32 %v493, %v522
        %524 = vdwg.mxu0
        %v525 = vmul.f32 %v520, 0.5
        %v526 = vmul.f32 %v523, 0.5
        %v527 = vmul.f32 %v520, 0.70710677
        %v528 = vmul.f32 %v523, 0.70710677
        %v529 = vmul.f32 %v527, %v527
        %v530 = vmin.f32 16.0, %v529
        %v531 = vmul.f32 %v530, 2.1237322e-06
        %v532 = vadd.f32 %v531, 0.00028619796
        %v533 = vmul.f32 %v530, %v532
        %v534 = vadd.f32 %v533, 0.0036580483
        %v535 = vmul.f32 %v530, %v534
        %v536 = vadd.f32 %v535, 0.05243302
        %v537 = vmul.f32 %v530, %v536
        %v538 = vadd.f32 %v537, 0.18741608
        %v539 = vmul.f32 %v530, %v538
        %v540 = vadd.f32 %v539, 1.1283791
        %v541 = vmul.f32 %v527, %v540
        %v542 = vmul.f32 %v530, 3.8918573e-05
        %v543 = vadd.f32 %v542, 0.001143296
        %v544 = vmul.f32 %v530, %v543
        %v545 = vadd.f32 %v544, 0.014752088
        %v546 = vmul.f32 %v530, %v545
        %v547 = vadd.f32 %v546, 0.112945676
        %v548 = vmul.f32 %v530, %v547
        %v549 = vadd.f32 %v548, 0.4994258
        %v550 = vmul.f32 %v530, %v549
        %v551 = vadd.f32 %v550, 1.0
        %v552 = vrcp.pop %v551
        %v553 = vmul.f32 %v551, %v552
        %v554 = vsub.f32 1.0, %v553
        %v555 = vmul.f32 %v552, %v554
        %v556 = vadd.f32 %v552, %v555
        %vm557 = vweird.f32 %v551
        %vm558 = vweird.f32 %v552
        %vm559 = vmor %vm557, %vm558
        %v560 = vsel %vm559, %v552, %v556
        %v561 = vand.u32 2147483647, %v551
        %vm562 = vcmp.eq.f32.partialorder %v561, 8.507059e+37
        %v563 = vand.u32 %v551, 2147483648
        %v564 = vor.u32 1.1754944e-38, %v563
        %v565 = vsel %vm562, %v564, %v560
        %v566 = vmul.f32 %v541, %v565
        %v567 = vmin.f32 %v566, 1.0
        %v568 = vmax.f32 %v567, -1.0
        %v569 = vmul.f32 %v528, %v528
        %v570 = vmin.f32 16.0, %v569
        %v571 = vmul.f32 %v570, 2.1237322e-06
        %v572 = vadd.f32 %v571, 0.00028619796
        %v573 = vmul.f32 %v570, %v572
        %v574 = vadd.f32 %v573, 0.0036580483
        %v575 = vmul.f32 %v570, %v574
        %v576 = vadd.f32 %v575, 0.05243302
        %v577 = vmul.f32 %v570, %v576
        %v578 = vadd.f32 %v577, 0.18741608
        %v579 = vmul.f32 %v570, %v578
        %v580 = vadd.f32 %v579, 1.1283791
        %v581 = vmul.f32 %v528, %v580
        %v582 = vmul.f32 %v570, 3.8918573e-05
        %v583 = vadd.f32 %v582, 0.001143296
        %v584 = vmul.f32 %v570, %v583
        %v585 = vadd.f32 %v584, 0.014752088
        %v586 = vmul.f32 %v570, %v585
        %v587 = vadd.f32 %v586, 0.112945676
        %v588 = vmul.f32 %v570, %v587
        %v589 = vadd.f32 %v588, 0.4994258
        %v590 = vmul.f32 %v570, %v589
        %v591 = vadd.f32 %v590, 1.0
        %v592 = vrcp.pop %v591
        %v593 = vmul.f32 %v591, %v592
        %v594 = vsub.f32 1.0, %v593
        %v595 = vmul.f32 %v592, %v594
        %v596 = vadd.f32 %v592, %v595
        %vm597 = vweird.f32 %v591
        %vm598 = vweird.f32 %v592
        %vm599 = vmor %vm597, %vm598
        %v600 = vsel %vm599, %v592, %v596
        %v601 = vand.u32 2147483647, %v591
        %vm602 = vcmp.eq.f32.partialorder %v601, 8.507059e+37
        %v603 = vand.u32 %v591, 2147483648
        %v604 = vor.u32 1.1754944e-38, %v603
        %v605 = vsel %vm602, %v604, %v600
        %v606 = vmul.f32 %v581, %v605
        %v607 = vmin.f32 %v606, 1.0
        %v608 = vmax.f32 %v607, -1.0
        %v609 = vadd.f32 %v568, 1.0
        %v610 = vadd.f32 %v608, 1.0
        %v611 = vmul.f32 %v525, %v609
        %v612 = vmul.f32 %v526, %v610
        %v613 = vld [vmem:[%s4] sm:$0xff]
        %v614 = vld [vmem:[%s4 + $0x8] sm:$0xff]
        %v615 = vld [vmem:[%s4 + $0x10] sm:$0xff]
        %v616 = vld [vmem:[%s4 + $0x18] sm:$0xff]
        %v617 = vld [vmem:[%s4 + $0x20] sm:$0xff]
        %v618 = vld [vmem:[%s4 + $0x28] sm:$0xff]
        %v619 = vld [vmem:[%s4 + $0x30] sm:$0xff]
        %v620 = vld [vmem:[%s4 + $0x38] sm:$0xff]
        %v621 = vld [vmem:[%s4 + $0x40] sm:$0xff]
        %v622 = vld [vmem:[%s4 + $0x48] sm:$0xff]
        %v623 = vld [vmem:[%s4 + $0x50] sm:$0xff]
        %v624 = vld [vmem:[%s4 + $0x58] sm:$0xff]
        %v625 = vld [vmem:[%s4 + $0x60] sm:$0xff]
        %v626 = vld [vmem:[%s4 + $0x68] sm:$0xff]
        %v627 = vld [vmem:[%s4 + $0x70] sm:$0xff]
        %v628 = vld [vmem:[%s4 + $0x78] sm:$0xff]
        %v629 = vld [vmem:[%s5] sm:$0x1]
        %v631 = vperm.slane %v629, 0
        %633 = vmatpush.msra.mxu0 %v628
        %634 = vmatpush.msra.mxu0 %v627
        %635 = vmatpush.msra.mxu0 %v626
        %636 = vmatpush.msra.mxu0 %v625
        %637 = vmatpush.msra.mxu0 %v624
        %638 = vmatpush.msra.mxu0 %v623
        %639 = vmatpush.msra.mxu0 %v622
        %640 = vmatpush.msra.mxu0 %v621
        %641 = vmatpush.msra.mxu0 %v620
        %642 = vmatpush.msra.mxu0 %v619
        %643 = vmatpush.msra.mxu0 %v618
        %644 = vmatpush.msra.mxu0 %v617
        %645 = vmatpush.msra.mxu0 %v616
        %646 = vmatpush.msra.mxu0 %v615
        %647 = vmatpush.msra.mxu0 %v614
        %648 = vmatpush.msra.mxu0 %v613
        %649 = vmatmul.f32.gmra.mxu0 %v611
        %v650 = vpop.f32.mrf.mxu0
        %v651 = vadd.f32 %v631, %v650
        %652 = vmatmul.f32.gmra.mxu0 %v612
        %v653 = vpop.f32.mrf.mxu0
        %v654 = vadd.f32 %v631, %v653
        %655 = vdwg.mxu0
        %v656 = vmul.f32 %v651, 0.5
        %v657 = vmul.f32 %v654, 0.5
        %v658 = vmul.f32 %v651, 0.70710677
        %v659 = vmul.f32 %v654, 0.70710677
        %v660 = vmul.f32 %v658, %v658
        %v661 = vmin.f32 16.0, %v660
        %v662 = vmul.f32 %v661, 2.1237322e-06
        %v663 = vadd.f32 %v662, 0.00028619796
        %v664 = vmul.f32 %v661, %v663
        %v665 = vadd.f32 %v664, 0.0036580483
        %v666 = vmul.f32 %v661, %v665
        %v667 = vadd.f32 %v666, 0.05243302
        %v668 = vmul.f32 %v661, %v667
        %v669 = vadd.f32 %v668, 0.18741608
        %v670 = vmul.f32 %v661, %v669
        %v671 = vadd.f32 %v670, 1.1283791
        %v672 = vmul.f32 %v658, %v671
        %v673 = vmul.f32 %v661, 3.8918573e-05
        %v674 = vadd.f32 %v673, 0.001143296
        %v675 = vmul.f32 %v661, %v674
        %v676 = vadd.f32 %v675, 0.014752088
        %v677 = vmul.f32 %v661, %v676
        %v678 = vadd.f32 %v677, 0.112945676
        %v679 = vmul.f32 %v661, %v678
        %v680 = vadd.f32 %v679, 0.4994258
        %v681 = vmul.f32 %v661, %v680
        %v682 = vadd.f32 %v681, 1.0
        %v683 = vrcp.pop %v682
        %v684 = vmul.f32 %v682, %v683
        %v685 = vsub.f32 1.0, %v684
        %v686 = vmul.f32 %v683, %v685
        %v687 = vadd.f32 %v683, %v686
        %vm688 = vweird.f32 %v682
        %vm689 = vweird.f32 %v683
        %vm690 = vmor %vm688, %vm689
        %v691 = vsel %vm690, %v683, %v687
        %v692 = vand.u32 2147483647, %v682
        %vm693 = vcmp.eq.f32.partialorder %v692, 8.507059e+37
        %v694 = vand.u32 %v682, 2147483648
        %v695 = vor.u32 1.1754944e-38, %v694
        %v696 = vsel %vm693, %v695, %v691
        %v697 = vmul.f32 %v672, %v696
        %v698 = vmin.f32 %v697, 1.0
        %v699 = vmax.f32 %v698, -1.0
        %v700 = vmul.f32 %v659, %v659
        %v701 = vmin.f32 16.0, %v700
        %v702 = vmul.f32 %v701, 2.1237322e-06
        %v703 = vadd.f32 %v702, 0.00028619796
        %v704 = vmul.f32 %v701, %v703
        %v705 = vadd.f32 %v704, 0.0036580483
        %v706 = vmul.f32 %v701, %v705
        %v707 = vadd.f32 %v706, 0.05243302
        %v708 = vmul.f32 %v701, %v707
        %v709 = vadd.f32 %v708, 0.18741608
        %v710 = vmul.f32 %v701, %v709
        %v711 = vadd.f32 %v710, 1.1283791
        %v712 = vmul.f32 %v659, %v711
        %v713 = vmul.f32 %v701, 3.8918573e-05
        %v714 = vadd.f32 %v713, 0.001143296
        %v715 = vmul.f32 %v701, %v714
        %v716 = vadd.f32 %v715, 0.014752088
        %v717 = vmul.f32 %v701, %v716
        %v718 = vadd.f32 %v717, 0.112945676
        %v719 = vmul.f32 %v701, %v718
        %v720 = vadd.f32 %v719, 0.4994258
        %v721 = vmul.f32 %v701, %v720
        %v722 = vadd.f32 %v721, 1.0
        %v723 = vrcp.pop %v722
        %v724 = vmul.f32 %v722, %v723
        %v725 = vsub.f32 1.0, %v724
        %v726 = vmul.f32 %v723, %v725
        %v727 = vadd.f32 %v723, %v726
        %vm728 = vweird.f32 %v722
        %vm729 = vweird.f32 %v723
        %vm730 = vmor %vm728, %vm729
        %v731 = vsel %vm730, %v723, %v727
        %v732 = vand.u32 2147483647, %v722
        %vm733 = vcmp.eq.f32.partialorder %v732, 8.507059e+37
        %v734 = vand.u32 %v722, 2147483648
        %v735 = vor.u32 1.1754944e-38, %v734
        %v736 = vsel %vm733, %v735, %v731
        %v737 = vmul.f32 %v712, %v736
        %v738 = vmin.f32 %v737, 1.0
        %v739 = vmax.f32 %v738, -1.0
        %v740 = vadd.f32 %v699, 1.0
        %v741 = vadd.f32 %v739, 1.0
        %v742 = vmul.f32 %v656, %v740
        %v743 = vmul.f32 %v657, %v741
        %v744 = vld [vmem:[%s6] sm:$0xff]
        %v745 = vld [vmem:[%s6 + $0x8] sm:$0xff]
        %v746 = vld [vmem:[%s6 + $0x10] sm:$0xff]
        %v747 = vld [vmem:[%s6 + $0x18] sm:$0xff]
        %v748 = vld [vmem:[%s6 + $0x20] sm:$0xff]
        %v749 = vld [vmem:[%s6 + $0x28] sm:$0xff]
        %v750 = vld [vmem:[%s6 + $0x30] sm:$0xff]
        %v751 = vld [vmem:[%s6 + $0x38] sm:$0xff]
        %v752 = vld [vmem:[%s6 + $0x40] sm:$0xff]
        %v753 = vld [vmem:[%s6 + $0x48] sm:$0xff]
        %v754 = vld [vmem:[%s6 + $0x50] sm:$0xff]
        %v755 = vld [vmem:[%s6 + $0x58] sm:$0xff]
        %v756 = vld [vmem:[%s6 + $0x60] sm:$0xff]
        %v757 = vld [vmem:[%s6 + $0x68] sm:$0xff]
        %v758 = vld [vmem:[%s6 + $0x70] sm:$0xff]
        %v759 = vld [vmem:[%s6 + $0x78] sm:$0xff]
        %v760 = vld [vmem:[%s7] sm:$0x1]
        %v762 = vperm.slane %v760, 0
        %764 = vmatpush.msra.mxu0 %v759
        %765 = vmatpush.msra.mxu0 %v758
        %766 = vmatpush.msra.mxu0 %v757
        %767 = vmatpush.msra.mxu0 %v756
        %768 = vmatpush.msra.mxu0 %v755
        %769 = vmatpush.msra.mxu0 %v754
        %770 = vmatpush.msra.mxu0 %v753
        %771 = vmatpush.msra.mxu0 %v752
        %772 = vmatpush.msra.mxu0 %v751
        %773 = vmatpush.msra.mxu0 %v750
        %774 = vmatpush.msra.mxu0 %v749
        %775 = vmatpush.msra.mxu0 %v748
        %776 = vmatpush.msra.mxu0 %v747
        %777 = vmatpush.msra.mxu0 %v746
        %778 = vmatpush.msra.mxu0 %v745
        %779 = vmatpush.msra.mxu0 %v744
        %780 = vmatmul.f32.gmra.mxu0 %v742
        %v781 = vpop.f32.mrf.mxu0
        %v782 = vadd.f32 %v762, %v781
        %783 = vmatmul.f32.gmra.mxu0 %v743
        %v784 = vpop.f32.mrf.mxu0
        %v785 = vadd.f32 %v762, %v784
        %786 = vdwg.mxu0
        %vm787 = vcmask 64512
        %788 = vst.msk [vmem:[%s387] sm:$0xff] %vm787, %v782
        %789 = vst.msk [vmem:[%s387 + $0x8] sm:$0xff] %vm787, %v785
        %s790 = smul.u32 2, %s25
        %p791 = scmp.lt.s32.totalorder %s790, 3
        %s792 = scalar_select %p791, %s790, 3
        %s793 = smul.addr %s792, 8
        %s794 = scalar_lea.vmem %s8, %s793
        // Predicated region
        $region65: #{tpu_custom_call.1} parent=51 // pred_check
          %p795 = pneg %p221
        $region66: #{tpu_custom_call.1} parent=51 // pred_check_branch
          %797 = sbr.rel (%p795) target = $region68
        $region67: #{tpu_custom_call.1} parent=51 // pred_region
          %s798 = smul.u32 2, %s25
        $region68: #{tpu_custom_call.1} parent=51 // pred_fallthru
          _
      $region52: #{tpu_custom_call.1} parent=5 // pred_fallthru
        _
      %p799 = scmp.le.s32.totalorder 2, %s20
      // Predicated region
      $region69: #{tpu_custom_call.1} parent=5 // pred_check
        %p800 = pneg %p799
      $region70: #{tpu_custom_call.1} parent=5 // pred_check_branch
        %802 = sbr.rel (%p800) target = $region72
      $region71: #{tpu_custom_call.1} parent=5 // pred_region
        %s803 = ssub.s32 %s20, 2
        // Predicated region
        $region73: #{tpu_custom_call.1} parent=71 // pred_check
          %p804 = pneg %p227
        $region74: #{tpu_custom_call.1} parent=71 // pred_check_branch
          %806 = sbr.rel (%p804) target = $region76
        $region75: #{tpu_custom_call.1} parent=71 // pred_region
          %s807 = smul.u32 2, %s26
          %p808 = scmp.lt.s32.totalorder %s807, 3
          %s809 = scalar_select %p808, %s807, 3
          %s810 = smul.addr %s809, 8
          %s811 = scalar_lea.vmem %s8, %s810
        $region76: #{tpu_custom_call.1} parent=71 // pred_fallthru
          _
      $region72: #{tpu_custom_call.1} parent=5 // pred_fallthru
        _
    $region6: #{tpu_custom_call.1} parent=1 // loop_footer
      %s24 = sadd.s32 1, %s20
    $region7: #{tpu_custom_call.1} parent=1 // loop_footer_branch
      %19 = sbr.rel target = $region3
    $region8: #{tpu_custom_call.1} parent=1 // loop_exit
      _
    %812 = vsyncpa [#allocation3], 1
    %s813 = scalar_lea.sflag [#allocation3], 1
    %814 = vsyncpa %s813, 1
    %815 = vsyncpa [#allocation5], 1
    %s816 = scalar_lea.sflag [#allocation5], 1
    %817 = vsyncpa %s816, 1

</llo_original>
